<compile_context>
chip_gen: v6e
topology: v6e:2x2x1
jax: 0.10.0
libtpu: 0.0.40
codegen_flags: <defaults>
</compile_context>

<pallas_src>
import functools

import jax
import jax.numpy as jnp
from jax import lax
from jax.experimental import pallas as pl
from jax.experimental.pallas import tpu as pltpu

EPS = 1e-5


def _basic_block_kernel(x_ref, w_ref, b_ref, o_ref, pad_ref, slab_ref, *, H, W):
    # x_ref   : (1, C, P)          one NCHW image, spatial flattened (P = H*W, lane-dense)
    # w_ref   : (2, C, 9*C)        BN-scale-folded weights, [conv][c_out, (kh*3+kw)*C + c_in]
    # b_ref   : (2, C, 1)          folded BN biases
    # o_ref   : (1, C, P)
    # pad_ref : (C, P + 2*(W+1))   VMEM scratch: flat zero-padded activation
    # slab_ref: (9*C, P)           VMEM scratch: im2col slab (contraction dim on sublanes)
    _, C, P = x_ref.shape
    G = W + 1                                    # one-sided flat pad width

    x = x_ref[0]                                 # (C, P); also the residual

    # Column-validity masks for horizontal taps (the flat pad handles the row taps).
    # Computed once, reused by both convs.
    ww = lax.broadcasted_iota(jnp.int32, (1, P), 1) % W
    col_ok = {-1: ww >= 1, 0: None, 1: ww <= W - 2}

    # Zero only the flat-pad border; the interior is fully overwritten each conv.
    # (Unconditional on purpose: scratch is per-core under megacore.)
    zero_border = jnp.zeros((C, G), jnp.float32)
    pad_ref[:, :G] = zero_border
    pad_ref[:, G + P:] = zero_border

    def conv3x3_bn(a, w, b):
        # a: (C, P) activation, w: (C, 9C), b: (C, 1)
        pad_ref[:, G:G + P] = a
        for kh in range(3):
            for kw in range(3):
                dh, dw = kh - 1, kw - 1
                tap = kh * 3 + kw
                if dh == 0 and dw == 0:
                    # Centre tap is the activation itself; skip the padded-buffer round trip.
                    slab_ref[tap * C:(tap + 1) * C, :] = a
                    continue
                start = G + dh * W + dw
                shifted = pad_ref[:, start:start + P]        # (C, P) ref-sliced load
                m = col_ok[dw]
                if m is not None:
                    shifted = jnp.where(m, shifted, 0.0)
                slab_ref[tap * C:(tap + 1) * C, :] = shifted
        # one MXU push per conv: (C, 9C) @ (9C, P) -> (C, P), lane-dense output
        return jnp.dot(w, slab_ref[...], preferred_element_type=jnp.float32) + b

    w0 = w_ref[0]
    w1 = w_ref[1]
    b0 = b_ref[0]
    b1 = b_ref[1]

    hidden = jnp.maximum(conv3x3_bn(x, w0, b0), 0.0)
    out = conv3x3_bn(hidden, w1, b1) + x
    o_ref[0] = jnp.maximum(out, 0.0)


def basic_block_pallas(x_nchw, w1_oihw, g1, be1, m1, v1,
                       w2_oihw, g2, be2, m2, v2):
    N, C, H, W = x_nchw.shape
    P = H * W
    x2d = x_nchw.reshape(N, C, P).astype(jnp.float32)   # free reshape of native NCHW

    def fold(w_oihw, g, b, m, v):
        scale = g / jnp.sqrt(v + EPS)                    # (C,)
        bias = b - m * scale                             # (C,)
        # OIHW -> (C_out, (kh*3+kw)*C_in + c_in), BN scale folded per output channel.
        w2d = jnp.transpose(w_oihw, (0, 2, 3, 1)).reshape(C, 9 * C) * scale[:, None]
        return w2d, bias

    w1_2d, b1 = fold(w1_oihw, g1, be1, m1, v1)
    w2_2d, b2 = fold(w2_oihw, g2, be2, m2, v2)
    w_all = jnp.stack([w1_2d, w2_2d]).astype(jnp.float32)             # (2, C, 9C)
    b_all = jnp.stack([b1, b2]).reshape(2, C, 1).astype(jnp.float32)  # (2, C, 1)

    kernel = functools.partial(_basic_block_kernel, H=H, W=W)

    out2d = pl.pallas_call(
        kernel,
        out_shape=jax.ShapeDtypeStruct((N, C, P), jnp.float32),
        grid_spec=pltpu.PrefetchScalarGridSpec(
            num_scalar_prefetch=0,
            grid=(N,),
            in_specs=[
                pl.BlockSpec((1, C, P), lambda n: (n, 0, 0)),
                pl.BlockSpec((2, C, 9 * C), lambda n: (0, 0, 0)),
                pl.BlockSpec((2, C, 1), lambda n: (0, 0, 0)),
            ],
            out_specs=pl.BlockSpec((1, C, P), lambda n: (n, 0, 0)),
            scratch_shapes=[
                pltpu.VMEM((C, P + 2 * (W + 1)), jnp.float32),
                pltpu.VMEM((9 * C, P), jnp.float32),
            ],
        ),
        compiler_params=pltpu.CompilerParams(
            dimension_semantics=("parallel",)),
    )(x2d, w_all, b_all)

    return out2d.reshape(N, C, H, W)


def basic_block_reference(x_nchw, w1, g1, be1, m1, v1, w2, g2, be2, m2, v2):
    def conv(x, w):
        return lax.conv_general_dilated(
            x, w, window_strides=(1, 1), padding=((1, 1), (1, 1)),
            dimension_numbers=("NCHW", "OIHW", "NCHW"))

    def bn(x, g, b, m, v):
        return ((x - m[None, :, None, None]) / jnp.sqrt(v + EPS)[None, :, None, None]
                * g[None, :, None, None] + b[None, :, None, None])

    out = jnp.maximum(bn(conv(x_nchw, w1), g1, be1, m1, v1), 0.0)
    out = bn(conv(out, w2), g2, be2, m2, v2)
    out = out + x_nchw
    return jnp.maximum(out, 0.0)


if __name__ == "__main__":
    # BasicBlock(inplanes=4, planes=4, dims=2, stride=1, downsample=None)
    N, C, H, W = 2, 4, 16, 16
    key = jax.random.PRNGKey(0)
    keys = jax.random.split(key, 8)

    x = jax.random.normal(keys[0], (N, C, H, W), jnp.float32)

    w1 = jax.random.normal(keys[1], (C, C, 3, 3), jnp.float32) * 0.1   # OIHW
    w2 = jax.random.normal(keys[2], (C, C, 3, 3), jnp.float32) * 0.1   # OIHW

    g1 = 1.0 + 0.1 * jax.random.normal(keys[3], (C,), jnp.float32)
    be1 = 0.1 * jax.random.normal(keys[4], (C,), jnp.float32)
    m1 = 0.05 * jnp.arange(C, dtype=jnp.float32)
    v1 = 1.0 + 0.1 * jnp.arange(C, dtype=jnp.float32)

    g2 = 1.0 + 0.1 * jax.random.normal(keys[5], (C,), jnp.float32)
    be2 = 0.1 * jax.random.normal(keys[6], (C,), jnp.float32)
    m2 = -0.05 * jnp.arange(C, dtype=jnp.float32)
    v2 = 1.0 + 0.05 * jnp.arange(C, dtype=jnp.float32)

    out = basic_block_pallas(x, w1, g1, be1, m1, v1, w2, g2, be2, m2, v2)
    out = jax.block_until_ready(out)

    ref = basic_block_reference(x, w1, g1, be1, m1, v1, w2, g2, be2, m2, v2)
    ref = jax.block_until_ready(ref)

    assert out.shape == (N, C, H, W)
    if not jnp.allclose(out, ref, atol=1e-4, rtol=1e-4):
        raise AssertionError("Pallas output mismatch vs reference")

    print("KERNEL_OK")
</pallas_src>

<mosaic_0001>
module attributes {stable_mosaic.version = 11 : i64} {
  func.func @_basic_block_kernel(%arg0: i32, %arg1: memref<1x4x256xf32, #tpu.memory_space<vmem>>, %arg2: memref<2x4x36xf32, #tpu.memory_space<vmem>>, %arg3: memref<2x4x1xf32, #tpu.memory_space<vmem>>, %arg4: memref<1x4x256xf32, #tpu.memory_space<vmem>>, %arg5: memref<4x290xf32, #tpu.memory_space<vmem>>, %arg6: memref<36x256xf32, #tpu.memory_space<vmem>>) attributes {dimension_semantics = [#tpu.dimension_semantics<parallel>], iteration_bounds = array<i64: 2>, scalar_prefetch = 0 : i64, scratch_operands = 2 : i64, tpu.core_type = #tpu.core_type<tc>, window_params = [{transform_indices = @transform_0, window_bounds = array<i64: 1, 4, 256>}, {pipeline_mode = #tpu.pipeline_mode<synchronous>, transform_indices = @transform_1, window_bounds = array<i64: 2, 4, 36>}, {pipeline_mode = #tpu.pipeline_mode<synchronous>, transform_indices = @transform_2, window_bounds = array<i64: 2, 4, 1>}, {transform_indices = @transform_3, window_bounds = array<i64: 1, 4, 256>}]} {
    %c0 = arith.constant 0 : index
    %c0_0 = arith.constant 0 : index
    %c0_1 = arith.constant 0 : index
    %0 = vector.load %arg1[%c0, %c0_0, %c0_1] : memref<1x4x256xf32, #tpu.memory_space<vmem>>, vector<1x4x256xf32>
    %1 = vector.shape_cast %0 : vector<1x4x256xf32> to vector<4x256xf32>
    %2 = tpu.iota {dimensions = array<i32: 1>} : vector<1x256xi32>
    %c16_i32 = arith.constant 16 : i32
    %c0_i32 = arith.constant 0 : i32
    %3 = arith.cmpi eq, %c16_i32, %c0_i32 : i32
    %c1_i32 = arith.constant 1 : i32
    %4 = arith.select %3, %c1_i32, %c16_i32 : i32
    %5 = vector.broadcast %4 : i32 to vector<1x256xi32>
    %6 = arith.remsi %2, %5 : vector<1x256xi32>
    %c0_i32_2 = arith.constant 0 : i32
    %7 = vector.broadcast %c0_i32_2 : i32 to vector<1x256xi32>
    %8 = arith.cmpi ne, %6, %7 : vector<1x256xi32>
    %c0_i32_3 = arith.constant 0 : i32
    %9 = vector.broadcast %c0_i32_3 : i32 to vector<1x256xi32>
    %10 = arith.cmpi slt, %6, %9 : vector<1x256xi32>
    %c0_i32_4 = arith.constant 0 : i32
    %11 = arith.cmpi slt, %4, %c0_i32_4 : i32
    %12 = vector.broadcast %11 : i1 to vector<1x256xi1>
    %13 = vector.broadcast %12 : vector<1x256xi1> to vector<1x256xi1>
    %14 = arith.xori %10, %13 : vector<1x256xi1>
    %15 = arith.andi %14, %8 : vector<1x256xi1>
    %16 = vector.broadcast %4 : i32 to vector<1x256xi32>
    %17 = arith.addi %6, %16 : vector<1x256xi32>
    %18 = arith.select %15, %17, %6 : vector<1x256xi1>, vector<1x256xi32>
    %c1_i32_5 = arith.constant 1 : i32
    %19 = vector.broadcast %c1_i32_5 : i32 to vector<1x256xi32>
    %20 = arith.cmpi sge, %18, %19 : vector<1x256xi32>
    %c14_i32 = arith.constant 14 : i32
    %21 = vector.broadcast %c14_i32 : i32 to vector<1x256xi32>
    %22 = arith.cmpi sle, %18, %21 : vector<1x256xi32>
    %cst = arith.constant 0.000000e+00 : f32
    %23 = vector.broadcast %cst : f32 to vector<4x17xf32>
    %c0_6 = arith.constant 0 : index
    %c0_7 = arith.constant 0 : index
    %24 = vector.load %arg5[%c0_6, %c0_7] : memref<4x290xf32, #tpu.memory_space<vmem>>, vector<4x17xf32>
    tpu.vector_store %arg5[%c0_6, %c0_7], %23 {strides = array<i32>} : memref<4x290xf32, #tpu.memory_space<vmem>>, vector<4x17xf32>,
    %c0_8 = arith.constant 0 : index
    %c273 = arith.constant 273 : index
    %25 = vector.load %arg5[%c0_8, %c273] : memref<4x290xf32, #tpu.memory_space<vmem>>, vector<4x17xf32>
    tpu.vector_store %arg5[%c0_8, %c273], %23 {strides = array<i32>} : memref<4x290xf32, #tpu.memory_space<vmem>>, vector<4x17xf32>,
    %c0_9 = arith.constant 0 : index
    %c0_10 = arith.constant 0 : index
    %c0_11 = arith.constant 0 : index
    %26 = vector.load %arg2[%c0_9, %c0_10, %c0_11] : memref<2x4x36xf32, #tpu.memory_space<vmem>>, vector<1x4x36xf32>
    %27 = vector.shape_cast %26 : vector<1x4x36xf32> to vector<4x36xf32>
    %c1 = arith.constant 1 : index
    %c0_12 = arith.constant 0 : index
    %c0_13 = arith.constant 0 : index
    %28 = vector.load %arg2[%c1, %c0_12, %c0_13] : memref<2x4x36xf32, #tpu.memory_space<vmem>>, vector<1x4x36xf32>
    %29 = vector.shape_cast %28 : vector<1x4x36xf32> to vector<4x36xf32>
    %c0_14 = arith.constant 0 : index
    %c0_15 = arith.constant 0 : index
    %c0_16 = arith.constant 0 : index
    %30 = vector.load %arg3[%c0_14, %c0_15, %c0_16] : memref<2x4x1xf32, #tpu.memory_space<vmem>>, vector<1x4x1xf32>
    %31 = vector.shape_cast %30 : vector<1x4x1xf32> to vector<4x1xf32>
    %c1_17 = arith.constant 1 : index
    %c0_18 = arith.constant 0 : index
    %c0_19 = arith.constant 0 : index
    %32 = vector.load %arg3[%c1_17, %c0_18, %c0_19] : memref<2x4x1xf32, #tpu.memory_space<vmem>>, vector<1x4x1xf32>
    %33 = vector.shape_cast %32 : vector<1x4x1xf32> to vector<4x1xf32>
    %c0_20 = arith.constant 0 : index
    %c17 = arith.constant 17 : index
    %34 = vector.load %arg5[%c0_20, %c17] : memref<4x290xf32, #tpu.memory_space<vmem>>, vector<4x256xf32>
    tpu.vector_store %arg5[%c0_20, %c17], %1 {strides = array<i32>} : memref<4x290xf32, #tpu.memory_space<vmem>>, vector<4x256xf32>,
    %c0_21 = arith.constant 0 : index
    %c0_22 = arith.constant 0 : index
    %35 = vector.load %arg5[%c0_21, %c0_22] : memref<4x290xf32, #tpu.memory_space<vmem>>, vector<4x256xf32>
    %cst_23 = arith.constant 0.000000e+00 : f32
    %36 = vector.shape_cast %20 : vector<1x256xi1> to vector<1x256xi1>
    %37 = vector.broadcast %36 : vector<1x256xi1> to vector<4x256xi1>
    %38 = vector.broadcast %cst_23 : f32 to vector<4x256xf32>
    %39 = arith.select %37, %35, %38 : vector<4x256xi1>, vector<4x256xf32>
    %c0_24 = arith.constant 0 : index
    %c0_25 = arith.constant 0 : index
    %40 = vector.load %arg6[%c0_24, %c0_25] : memref<36x256xf32, #tpu.memory_space<vmem>>, vector<4x256xf32>
    tpu.vector_store %arg6[%c0_24, %c0_25], %39 {strides = array<i32>} : memref<36x256xf32, #tpu.memory_space<vmem>>, vector<4x256xf32>,
    %c0_26 = arith.constant 0 : index
    %c1_27 = arith.constant 1 : index
    %41 = vector.load %arg5[%c0_26, %c1_27] : memref<4x290xf32, #tpu.memory_space<vmem>>, vector<4x256xf32>
    %c4 = arith.constant 4 : index
    %c0_28 = arith.constant 0 : index
    %42 = vector.load %arg6[%c4, %c0_28] : memref<36x256xf32, #tpu.memory_space<vmem>>, vector<4x256xf32>
    tpu.vector_store %arg6[%c4, %c0_28], %41 {strides = array<i32>} : memref<36x256xf32, #tpu.memory_space<vmem>>, vector<4x256xf32>,
    %c0_29 = arith.constant 0 : index
    %c2 = arith.constant 2 : index
    %43 = vector.load %arg5[%c0_29, %c2] : memref<4x290xf32, #tpu.memory_space<vmem>>, vector<4x256xf32>
    %cst_30 = arith.constant 0.000000e+00 : f32
    %44 = vector.shape_cast %22 : vector<1x256xi1> to vector<1x256xi1>
    %45 = vector.broadcast %44 : vector<1x256xi1> to vector<4x256xi1>
    %46 = vector.broadcast %cst_30 : f32 to vector<4x256xf32>
    %47 = arith.select %45, %43, %46 : vector<4x256xi1>, vector<4x256xf32>
    %c8 = arith.constant 8 : index
    %c0_31 = arith.constant 0 : index
    %48 = vector.load %arg6[%c8, %c0_31] : memref<36x256xf32, #tpu.memory_space<vmem>>, vector<4x256xf32>
    tpu.vector_store %arg6[%c8, %c0_31], %47 {strides = array<i32>} : memref<36x256xf32, #tpu.memory_space<vmem>>, vector<4x256xf32>,
    %c0_32 = arith.constant 0 : index
    %c16 = arith.constant 16 : index
    %49 = vector.load %arg5[%c0_32, %c16] : memref<4x290xf32, #tpu.memory_space<vmem>>, vector<4x256xf32>
    %cst_33 = arith.constant 0.000000e+00 : f32
    %50 = vector.shape_cast %20 : vector<1x256xi1> to vector<1x256xi1>
    %51 = vector.broadcast %50 : vector<1x256xi1> to vector<4x256xi1>
    %52 = vector.broadcast %cst_33 : f32 to vector<4x256xf32>
    %53 = arith.select %51, %49, %52 : vector<4x256xi1>, vector<4x256xf32>
    %c12 = arith.constant 12 : index
    %c0_34 = arith.constant 0 : index
    %54 = vector.load %arg6[%c12, %c0_34] : memref<36x256xf32, #tpu.memory_space<vmem>>, vector<4x256xf32>
    tpu.vector_store %arg6[%c12, %c0_34], %53 {strides = array<i32>} : memref<36x256xf32, #tpu.memory_space<vmem>>, vector<4x256xf32>,
    %c16_35 = arith.constant 16 : index
    %c0_36 = arith.constant 0 : index
    %55 = vector.load %arg6[%c16_35, %c0_36] : memref<36x256xf32, #tpu.memory_space<vmem>>, vector<4x256xf32>
    tpu.vector_store %arg6[%c16_35, %c0_36], %1 {strides = array<i32>} : memref<36x256xf32, #tpu.memory_space<vmem>>, vector<4x256xf32>,
    %c0_37 = arith.constant 0 : index
    %c18 = arith.constant 18 : index
    %56 = vector.load %arg5[%c0_37, %c18] : memref<4x290xf32, #tpu.memory_space<vmem>>, vector<4x256xf32>
    %cst_38 = arith.constant 0.000000e+00 : f32
    %57 = vector.shape_cast %22 : vector<1x256xi1> to vector<1x256xi1>
    %58 = vector.broadcast %57 : vector<1x256xi1> to vector<4x256xi1>
    %59 = vector.broadcast %cst_38 : f32 to vector<4x256xf32>
    %60 = arith.select %58, %56, %59 : vector<4x256xi1>, vector<4x256xf32>
    %c20 = arith.constant 20 : index
    %c0_39 = arith.constant 0 : index
    %61 = vector.load %arg6[%c20, %c0_39] : memref<36x256xf32, #tpu.memory_space<vmem>>, vector<4x256xf32>
    tpu.vector_store %arg6[%c20, %c0_39], %60 {strides = array<i32>} : memref<36x256xf32, #tpu.memory_space<vmem>>, vector<4x256xf32>,
    %c0_40 = arith.constant 0 : index
    %c32 = arith.constant 32 : index
    %62 = vector.load %arg5[%c0_40, %c32] : memref<4x290xf32, #tpu.memory_space<vmem>>, vector<4x256xf32>
    %cst_41 = arith.constant 0.000000e+00 : f32
    %63 = vector.shape_cast %20 : vector<1x256xi1> to vector<1x256xi1>
    %64 = vector.broadcast %63 : vector<1x256xi1> to vector<4x256xi1>
    %65 = vector.broadcast %cst_41 : f32 to vector<4x256xf32>
    %66 = arith.select %64, %62, %65 : vector<4x256xi1>, vector<4x256xf32>
    %c24 = arith.constant 24 : index
    %c0_42 = arith.constant 0 : index
    %67 = vector.load %arg6[%c24, %c0_42] : memref<36x256xf32, #tpu.memory_space<vmem>>, vector<4x256xf32>
    tpu.vector_store %arg6[%c24, %c0_42], %66 {strides = array<i32>} : memref<36x256xf32, #tpu.memory_space<vmem>>, vector<4x256xf32>,
    %c0_43 = arith.constant 0 : index
    %c33 = arith.constant 33 : index
    %68 = vector.load %arg5[%c0_43, %c33] : memref<4x290xf32, #tpu.memory_space<vmem>>, vector<4x256xf32>
    %c28 = arith.constant 28 : index
    %c0_44 = arith.constant 0 : index
    %69 = vector.load %arg6[%c28, %c0_44] : memref<36x256xf32, #tpu.memory_space<vmem>>, vector<4x256xf32>
    tpu.vector_store %arg6[%c28, %c0_44], %68 {strides = array<i32>} : memref<36x256xf32, #tpu.memory_space<vmem>>, vector<4x256xf32>,
    %c0_45 = arith.constant 0 : index
    %c34 = arith.constant 34 : index
    %70 = vector.load %arg5[%c0_45, %c34] : memref<4x290xf32, #tpu.memory_space<vmem>>, vector<4x256xf32>
    %cst_46 = arith.constant 0.000000e+00 : f32
    %71 = vector.shape_cast %22 : vector<1x256xi1> to vector<1x256xi1>
    %72 = vector.broadcast %71 : vector<1x256xi1> to vector<4x256xi1>
    %73 = vector.broadcast %cst_46 : f32 to vector<4x256xf32>
    %74 = arith.select %72, %70, %73 : vector<4x256xi1>, vector<4x256xf32>
    %c32_47 = arith.constant 32 : index
    %c0_48 = arith.constant 0 : index
    %75 = vector.load %arg6[%c32_47, %c0_48] : memref<36x256xf32, #tpu.memory_space<vmem>>, vector<4x256xf32>
    tpu.vector_store %arg6[%c32_47, %c0_48], %74 {strides = array<i32>} : memref<36x256xf32, #tpu.memory_space<vmem>>, vector<4x256xf32>,
    %c0_49 = arith.constant 0 : index
    %c0_50 = arith.constant 0 : index
    %76 = vector.load %arg6[%c0_49, %c0_50] : memref<36x256xf32, #tpu.memory_space<vmem>>, vector<36x256xf32>
    %cst_51 = arith.constant dense<0.000000e+00> : vector<4x256xf32>
    %77 = tpu.matmul %27, %76, %cst_51 {dimension_numbers = #tpu.dot_dimension_numbers<[1], [0], [0], [1], [0, 0, 1, 1], [], []>} : vector<4x36xf32>, vector<36x256xf32>, vector<4x256xf32> -> vector<4x256xf32>
    %78 = vector.broadcast %31 : vector<4x1xf32> to vector<4x256xf32>
    %79 = arith.addf %77, %78 : vector<4x256xf32>
    %cst_52 = arith.constant 0.000000e+00 : f32
    %80 = vector.broadcast %cst_52 : f32 to vector<4x256xf32>
    %81 = arith.maximumf %79, %80 : vector<4x256xf32>
    %c0_53 = arith.constant 0 : index
    %c17_54 = arith.constant 17 : index
    %82 = vector.load %arg5[%c0_53, %c17_54] : memref<4x290xf32, #tpu.memory_space<vmem>>, vector<4x256xf32>
    tpu.vector_store %arg5[%c0_53, %c17_54], %81 {strides = array<i32>} : memref<4x290xf32, #tpu.memory_space<vmem>>, vector<4x256xf32>,
    %c0_55 = arith.constant 0 : index
    %c0_56 = arith.constant 0 : index
    %83 = vector.load %arg5[%c0_55, %c0_56] : memref<4x290xf32, #tpu.memory_space<vmem>>, vector<4x256xf32>
    %cst_57 = arith.constant 0.000000e+00 : f32
    %84 = vector.shape_cast %20 : vector<1x256xi1> to vector<1x256xi1>
    %85 = vector.broadcast %84 : vector<1x256xi1> to vector<4x256xi1>
    %86 = vector.broadcast %cst_57 : f32 to vector<4x256xf32>
    %87 = arith.select %85, %83, %86 : vector<4x256xi1>, vector<4x256xf32>
    %c0_58 = arith.constant 0 : index
    %c0_59 = arith.constant 0 : index
    %88 = vector.load %arg6[%c0_58, %c0_59] : memref<36x256xf32, #tpu.memory_space<vmem>>, vector<4x256xf32>
    tpu.vector_store %arg6[%c0_58, %c0_59], %87 {strides = array<i32>} : memref<36x256xf32, #tpu.memory_space<vmem>>, vector<4x256xf32>,
    %c0_60 = arith.constant 0 : index
    %c1_61 = arith.constant 1 : index
    %89 = vector.load %arg5[%c0_60, %c1_61] : memref<4x290xf32, #tpu.memory_space<vmem>>, vector<4x256xf32>
    %c4_62 = arith.constant 4 : index
    %c0_63 = arith.constant 0 : index
    %90 = vector.load %arg6[%c4_62, %c0_63] : memref<36x256xf32, #tpu.memory_space<vmem>>, vector<4x256xf32>
    tpu.vector_store %arg6[%c4_62, %c0_63], %89 {strides = array<i32>} : memref<36x256xf32, #tpu.memory_space<vmem>>, vector<4x256xf32>,
    %c0_64 = arith.constant 0 : index
    %c2_65 = arith.constant 2 : index
    %91 = vector.load %arg5[%c0_64, %c2_65] : memref<4x290xf32, #tpu.memory_space<vmem>>, vector<4x256xf32>
    %cst_66 = arith.constant 0.000000e+00 : f32
    %92 = vector.shape_cast %22 : vector<1x256xi1> to vector<1x256xi1>
    %93 = vector.broadcast %92 : vector<1x256xi1> to vector<4x256xi1>
    %94 = vector.broadcast %cst_66 : f32 to vector<4x256xf32>
    %95 = arith.select %93, %91, %94 : vector<4x256xi1>, vector<4x256xf32>
    %c8_67 = arith.constant 8 : index
    %c0_68 = arith.constant 0 : index
    %96 = vector.load %arg6[%c8_67, %c0_68] : memref<36x256xf32, #tpu.memory_space<vmem>>, vector<4x256xf32>
    tpu.vector_store %arg6[%c8_67, %c0_68], %95 {strides = array<i32>} : memref<36x256xf32, #tpu.memory_space<vmem>>, vector<4x256xf32>,
    %c0_69 = arith.constant 0 : index
    %c16_70 = arith.constant 16 : index
    %97 = vector.load %arg5[%c0_69, %c16_70] : memref<4x290xf32, #tpu.memory_space<vmem>>, vector<4x256xf32>
    %cst_71 = arith.constant 0.000000e+00 : f32
    %98 = vector.shape_cast %20 : vector<1x256xi1> to vector<1x256xi1>
    %99 = vector.broadcast %98 : vector<1x256xi1> to vector<4x256xi1>
    %100 = vector.broadcast %cst_71 : f32 to vector<4x256xf32>
    %101 = arith.select %99, %97, %100 : vector<4x256xi1>, vector<4x256xf32>
    %c12_72 = arith.constant 12 : index
    %c0_73 = arith.constant 0 : index
    %102 = vector.load %arg6[%c12_72, %c0_73] : memref<36x256xf32, #tpu.memory_space<vmem>>, vector<4x256xf32>
    tpu.vector_store %arg6[%c12_72, %c0_73], %101 {strides = array<i32>} : memref<36x256xf32, #tpu.memory_space<vmem>>, vector<4x256xf32>,
    %c16_74 = arith.constant 16 : index
    %c0_75 = arith.constant 0 : index
    %103 = vector.load %arg6[%c16_74, %c0_75] : memref<36x256xf32, #tpu.memory_space<vmem>>, vector<4x256xf32>
    tpu.vector_store %arg6[%c16_74, %c0_75], %81 {strides = array<i32>} : memref<36x256xf32, #tpu.memory_space<vmem>>, vector<4x256xf32>,
    %c0_76 = arith.constant 0 : index
    %c18_77 = arith.constant 18 : index
    %104 = vector.load %arg5[%c0_76, %c18_77] : memref<4x290xf32, #tpu.memory_space<vmem>>, vector<4x256xf32>
    %cst_78 = arith.constant 0.000000e+00 : f32
    %105 = vector.shape_cast %22 : vector<1x256xi1> to vector<1x256xi1>
    %106 = vector.broadcast %105 : vector<1x256xi1> to vector<4x256xi1>
    %107 = vector.broadcast %cst_78 : f32 to vector<4x256xf32>
    %108 = arith.select %106, %104, %107 : vector<4x256xi1>, vector<4x256xf32>
    %c20_79 = arith.constant 20 : index
    %c0_80 = arith.constant 0 : index
    %109 = vector.load %arg6[%c20_79, %c0_80] : memref<36x256xf32, #tpu.memory_space<vmem>>, vector<4x256xf32>
    tpu.vector_store %arg6[%c20_79, %c0_80], %108 {strides = array<i32>} : memref<36x256xf32, #tpu.memory_space<vmem>>, vector<4x256xf32>,
    %c0_81 = arith.constant 0 : index
    %c32_82 = arith.constant 32 : index
    %110 = vector.load %arg5[%c0_81, %c32_82] : memref<4x290xf32, #tpu.memory_space<vmem>>, vector<4x256xf32>
    %cst_83 = arith.constant 0.000000e+00 : f32
    %111 = vector.shape_cast %20 : vector<1x256xi1> to vector<1x256xi1>
    %112 = vector.broadcast %111 : vector<1x256xi1> to vector<4x256xi1>
    %113 = vector.broadcast %cst_83 : f32 to vector<4x256xf32>
    %114 = arith.select %112, %110, %113 : vector<4x256xi1>, vector<4x256xf32>
    %c24_84 = arith.constant 24 : index
    %c0_85 = arith.constant 0 : index
    %115 = vector.load %arg6[%c24_84, %c0_85] : memref<36x256xf32, #tpu.memory_space<vmem>>, vector<4x256xf32>
    tpu.vector_store %arg6[%c24_84, %c0_85], %114 {strides = array<i32>} : memref<36x256xf32, #tpu.memory_space<vmem>>, vector<4x256xf32>,
    %c0_86 = arith.constant 0 : index
    %c33_87 = arith.constant 33 : index
    %116 = vector.load %arg5[%c0_86, %c33_87] : memref<4x290xf32, #tpu.memory_space<vmem>>, vector<4x256xf32>
    %c28_88 = arith.constant 28 : index
    %c0_89 = arith.constant 0 : index
    %117 = vector.load %arg6[%c28_88, %c0_89] : memref<36x256xf32, #tpu.memory_space<vmem>>, vector<4x256xf32>
    tpu.vector_store %arg6[%c28_88, %c0_89], %116 {strides = array<i32>} : memref<36x256xf32, #tpu.memory_space<vmem>>, vector<4x256xf32>,
    %c0_90 = arith.constant 0 : index
    %c34_91 = arith.constant 34 : index
    %118 = vector.load %arg5[%c0_90, %c34_91] : memref<4x290xf32, #tpu.memory_space<vmem>>, vector<4x256xf32>
    %cst_92 = arith.constant 0.000000e+00 : f32
    %119 = vector.shape_cast %22 : vector<1x256xi1> to vector<1x256xi1>
    %120 = vector.broadcast %119 : vector<1x256xi1> to vector<4x256xi1>
    %121 = vector.broadcast %cst_92 : f32 to vector<4x256xf32>
    %122 = arith.select %120, %118, %121 : vector<4x256xi1>, vector<4x256xf32>
    %c32_93 = arith.constant 32 : index
    %c0_94 = arith.constant 0 : index
    %123 = vector.load %arg6[%c32_93, %c0_94] : memref<36x256xf32, #tpu.memory_space<vmem>>, vector<4x256xf32>
    tpu.vector_store %arg6[%c32_93, %c0_94], %122 {strides = array<i32>} : memref<36x256xf32, #tpu.memory_space<vmem>>, vector<4x256xf32>,
    %c0_95 = arith.constant 0 : index
    %c0_96 = arith.constant 0 : index
    %124 = vector.load %arg6[%c0_95, %c0_96] : memref<36x256xf32, #tpu.memory_space<vmem>>, vector<36x256xf32>
    %cst_97 = arith.constant dense<0.000000e+00> : vector<4x256xf32>
    %125 = tpu.matmul %29, %124, %cst_97 {dimension_numbers = #tpu.dot_dimension_numbers<[1], [0], [0], [1], [0, 0, 1, 1], [], []>} : vector<4x36xf32>, vector<36x256xf32>, vector<4x256xf32> -> vector<4x256xf32>
    %126 = vector.broadcast %33 : vector<4x1xf32> to vector<4x256xf32>
    %127 = arith.addf %125, %126 : vector<4x256xf32>
    %128 = arith.addf %127, %1 : vector<4x256xf32>
    %cst_98 = arith.constant 0.000000e+00 : f32
    %129 = vector.broadcast %cst_98 : f32 to vector<4x256xf32>
    %130 = arith.maximumf %128, %129 : vector<4x256xf32>
    %c0_99 = arith.constant 0 : index
    %c0_100 = arith.constant 0 : index
    %c0_101 = arith.constant 0 : index
    %131 = vector.load %arg4[%c0_99, %c0_100, %c0_101] : memref<1x4x256xf32, #tpu.memory_space<vmem>>, vector<1x4x256xf32>
    %132 = vector.shape_cast %131 : vector<1x4x256xf32> to vector<4x256xf32>
    %133 = vector.shape_cast %130 : vector<4x256xf32> to vector<1x4x256xf32>
    tpu.vector_store %arg4[%c0_99, %c0_100, %c0_101], %133 {strides = array<i32>} : memref<1x4x256xf32, #tpu.memory_space<vmem>>, vector<1x4x256xf32>,
    return
  }
  func.func @transform_0(%arg0: i32) -> (i32, i32, i32) {
    %c0_i32 = arith.constant 0 : i32
    %c0_i32_0 = arith.constant 0 : i32
    %c0_i32_1 = arith.constant 0 : i32
    return %arg0, %c0_i32, %c0_i32_0 : i32, i32, i32
  }
  func.func @transform_1(%arg0: i32) -> (i32, i32, i32) {
    %c0_i32 = arith.constant 0 : i32
    %c0_i32_0 = arith.constant 0 : i32
    %c0_i32_1 = arith.constant 0 : i32
    %c0_i32_2 = arith.constant 0 : i32
    return %c0_i32, %c0_i32_0, %c0_i32_1 : i32, i32, i32
  }
  func.func @transform_2(%arg0: i32) -> (i32, i32, i32) {
    %c0_i32 = arith.constant 0 : i32
    %c0_i32_0 = arith.constant 0 : i32
    %c0_i32_1 = arith.constant 0 : i32
    %c0_i32_2 = arith.constant 0 : i32
    return %c0_i32, %c0_i32_0, %c0_i32_1 : i32, i32, i32
  }
  func.func @transform_3(%arg0: i32) -> (i32, i32, i32) {
    %c0_i32 = arith.constant 0 : i32
    %c0_i32_0 = arith.constant 0 : i32
    %c0_i32_1 = arith.constant 0 : i32
    return %arg0, %c0_i32, %c0_i32_0 : i32, i32, i32
  }
}

</mosaic_0001>

<llo_original>
// kernel: tpu_custom_call.1
$region0: #{tpu_custom_call.1}
  #allocation0 [shape = 'u32[]', space=smem, size = 0x4, offset = 0x4, fixed_abs, tag = 'smem constant byte address 0x4 - core index']
  #allocation1 [shape = 'u32[144,128]{1,0:T(1,128)}', space=vmem, size = 0x12000, scoped, tag = 'internal scratch']
  #allocation2 [shape = 'f32[4,290]{1,0:T(4,128)}', space=vmem, size = 0x1800, scoped, tag = 'scratch operand']
  #allocation3 [shape = 'f32[36,256]{1,0:T(8,128)}', space=vmem, size = 0xa000, scoped, tag = 'scratch operand']
  %s0 = inlined_call_operand.hbm [shape: f32[2,4,256], index: 0, kind: input, shape index: {}]
  %s1 = inlined_call_operand.vmem [shape: f32[2,4,36], index: 1, kind: input, shape index: {}]
  %s2 = inlined_call_operand.vmem [shape: f32[2,4,1], index: 2, kind: input, shape index: {}]
  %s3 = inlined_call_operand.hbm [shape: f32[2,4,256], index: 3, kind: output, shape index: {}]
  %s4 = sld [smem:[#allocation0]]
  $region49: #{tpu_custom_call.1} parent=0
    _
  %s6 = ssub.s32 1, %s4
  %s7 = scalar_select 0, %s6, %s4
  $region1: #{tpu_custom_call.1} parent=0
    #allocation4 [shape = 'u8[8192]{0}', space=vmem, size = 0x2000, scoped, tag = 'input window, operand 0']
    #allocation5 [shape = 's32[2]{0}', space=sflag, size = 0x8, scoped, tag = 'scoped memory for tpu_custom_call.1']
    #allocation6 [shape = 's32[2]{0}', space=sflag, size = 0x8, scoped, tag = 'scoped memory for tpu_custom_call.1']
    #allocation7 [shape = 'u8[8192]{0}', space=vmem, size = 0x2000, scoped, tag = 'output window, operand 0']
    %8 = vsyncpa [#allocation5], 0
    %s9 = scalar_lea.sflag [#allocation5], 1
    %10 = vsyncpa %s9, 0
    %11 = vsyncpa [#allocation6], 0
    %s12 = scalar_lea.sflag [#allocation6], 1
    %13 = vsyncpa %s12, 0
    loop: start=0, step=1, limit=4
    $region2: #{tpu_custom_call.1} parent=1 // loop_pre_header
      _
    $region3: #{tpu_custom_call.1} parent=1 // loop_header
      %s15 = sphi 0, %s19
      %p16 = scmp.ge.s32.totalorder %s15, 4
      %s25 = sphi 0, %s27
      %s28 = sphi 0, %s25
      %s29 = sphi 0, %s28
      %s45 = sphi 0, %s29
      %s49 = sphi 0, %s49
      %s51 = sphi 0, %s49
      %s52 = sphi 0, %s51
      %s66 = sphi 0, %s52
      %s70 = sphi 0, %s70
      %s72 = sphi 0, %s70
      %s73 = sphi 0, %s72
      %s87 = sphi 0, %s73
      %s93 = sphi 0, %s95
      %s96 = sphi 0, %s93
      %s97 = sphi 0, %s96
      %s113 = sphi 0, %s97
    $region4: #{tpu_custom_call.1} parent=1 // loop_header_branch
      %18 = sbr.rel (%p16) target = $region8
    $region5: #{tpu_custom_call.1} parent=1 // loop_body
      %s20 = ssub.s32 %s15, 1
      %s21 = ssub.s32 %s15, 2
      %s22 = sadd.s32 %s15, 1
      %s23 = ssub.s32 %s15, %s22
      %p24 = scmp.eq.s32.totalorder %s23, 0
      %s26 = sadd.s32 %s25, 1
      %s27 = scalar_select %p24, %s25, %s26
      %p30 = pneg %p24
      %p31 = scmp.eq.s32.totalorder %s15, 1
      %p32 = por %p30, %p31
      %p33 = scmp.ne.s32.totalorder %s25, %s28
      %p34 = scmp.eq.s32.totalorder %s15, 0
      %p35 = por %p33, %p34
      %p36 = scmp.ne.s32.totalorder %s25, %s28
      %p37 = scmp.eq.s32.totalorder %s20, 1
      %p38 = por %p36, %p37
      %p39 = scmp.ne.s32.totalorder %s28, %s29
      %p40 = scmp.eq.s32.totalorder %s20, 0
      %p41 = por %p39, %p40
      %p42 = scmp.ne.s32.totalorder %s28, %s29
      %p43 = scmp.eq.s32.totalorder %s21, 1
      %p44 = por %p42, %p43
      %p46 = scmp.ne.s32.totalorder %s29, %s45
      %p47 = scmp.eq.s32.totalorder %s21, 0
      %p48 = por %p46, %p47
      %s50 = sadd.s32 %s49, 1
      %p53 = scmp.eq.s32.totalorder %s15, 1
      %p54 = scmp.ne.s32.totalorder %s49, %s51
      %p55 = scmp.eq.s32.totalorder %s15, 0
      %p56 = por %p54, %p55
      %p57 = scmp.ne.s32.totalorder %s49, %s51
      %p58 = scmp.eq.s32.totalorder %s20, 1
      %p59 = por %p57, %p58
      %p60 = scmp.ne.s32.totalorder %s51, %s52
      %p61 = scmp.eq.s32.totalorder %s20, 0
      %p62 = por %p60, %p61
      %p63 = scmp.ne.s32.totalorder %s51, %s52
      %p64 = scmp.eq.s32.totalorder %s21, 1
      %p65 = por %p63, %p64
      %p67 = scmp.ne.s32.totalorder %s52, %s66
      %p68 = scmp.eq.s32.totalorder %s21, 0
      %p69 = por %p67, %p68
      %s71 = sadd.s32 %s70, 1
      %p74 = scmp.eq.s32.totalorder %s15, 1
      %p75 = scmp.ne.s32.totalorder %s70, %s72
      %p76 = scmp.eq.s32.totalorder %s15, 0
      %p77 = por %p75, %p76
      %p78 = scmp.ne.s32.totalorder %s70, %s72
      %p79 = scmp.eq.s32.totalorder %s20, 1
      %p80 = por %p78, %p79
      %p81 = scmp.ne.s32.totalorder %s72, %s73
      %p82 = scmp.eq.s32.totalorder %s20, 0
      %p83 = por %p81, %p82
      %p84 = scmp.ne.s32.totalorder %s72, %s73
      %p85 = scmp.eq.s32.totalorder %s21, 1
      %p86 = por %p84, %p85
      %p88 = scmp.ne.s32.totalorder %s73, %s87
      %p89 = scmp.eq.s32.totalorder %s21, 0
      %p90 = por %p88, %p89
      %s91 = ssub.s32 %s15, %s22
      %p92 = scmp.eq.s32.totalorder %s91, 0
      %s94 = sadd.s32 %s93, 1
      %s95 = scalar_select %p92, %s93, %s94
      %p98 = pneg %p92
      %p99 = scmp.eq.s32.totalorder %s15, 1
      %p100 = por %p98, %p99
      %p101 = scmp.ne.s32.totalorder %s93, %s96
      %p102 = scmp.eq.s32.totalorder %s15, 0
      %p103 = por %p101, %p102
      %p104 = scmp.ne.s32.totalorder %s93, %s96
      %p105 = scmp.eq.s32.totalorder %s20, 1
      %p106 = por %p104, %p105
      %p107 = scmp.ne.s32.totalorder %s96, %s97
      %p108 = scmp.eq.s32.totalorder %s20, 0
      %p109 = por %p107, %p108
      %p110 = scmp.ne.s32.totalorder %s96, %s97
      %p111 = scmp.eq.s32.totalorder %s21, 1
      %p112 = por %p110, %p111
      %p114 = scmp.ne.s32.totalorder %s97, %s113
      %p115 = scmp.eq.s32.totalorder %s21, 0
      %p116 = por %p114, %p115
      %p117 = scmp.le.s32.totalorder 1, %s15
      %p118 = scmp.lt.s32.totalorder %s15, 3
      %p119 = pnand %p117, %p118
      %p120 = pneg %p119
      // Predicated region
      $region9: #{tpu_custom_call.1} parent=5 // pred_check
        _
      $region10: #{tpu_custom_call.1} parent=5 // pred_check_branch
        %122 = sbr.rel (%p119) target = $region12
      $region11: #{tpu_custom_call.1} parent=5 // pred_region
        %s123 = ssub.s32 %s15, 1
        // Predicated region
        $region13: #{tpu_custom_call.1} parent=11 // pred_check
          %p124 = pneg %p62
        $region14: #{tpu_custom_call.1} parent=11 // pred_check_branch
          %126 = sbr.rel (%p124) target = $region16
        $region15: #{tpu_custom_call.1} parent=11 // pred_region
          _
        $region16: #{tpu_custom_call.1} parent=11 // pred_fallthru
          _
        // Predicated region
        $region17: #{tpu_custom_call.1} parent=11 // pred_check
          %p127 = pneg %p83
        $region18: #{tpu_custom_call.1} parent=11 // pred_check_branch
          %129 = sbr.rel (%p127) target = $region20
        $region19: #{tpu_custom_call.1} parent=11 // pred_region
          _
        $region20: #{tpu_custom_call.1} parent=11 // pred_fallthru
          _
      $region12: #{tpu_custom_call.1} parent=5 // pred_fallthru
        _
      %p130 = scmp.lt.s32.totalorder %s15, 2
      // Predicated region
      $region21: #{tpu_custom_call.1} parent=5 // pred_check
        %p131 = pneg %p130
      $region22: #{tpu_custom_call.1} parent=5 // pred_check_branch
        %133 = sbr.rel (%p131) target = $region24
      $region23: #{tpu_custom_call.1} parent=5 // pred_region
        // Predicated region
        $region25: #{tpu_custom_call.1} parent=23 // pred_check
          %p134 = pneg %p35
        $region26: #{tpu_custom_call.1} parent=23 // pred_check_branch
          %136 = sbr.rel (%p134) target = $region28
        $region27: #{tpu_custom_call.1} parent=23 // pred_region
          %s137 = sand.u32 %s25, 1
          %s138 = scalar_lea.sflag [#allocation5], %s137
          %s139 = sand.u32 %s25, 1
          %s140 = smul.addr %s139, 8
          %s141 = scalar_lea.vmem [#allocation4], %s140
          %s143 = ssub.s32 128, 128
          %144 = vsyncadd %s138, %s143
          %s145 = smul.addr %s15, 2
          %s146 = smul.addr %s145, 64
          %s147 = scalar_lea.hbm %s0, %s146
          %s149 = sshll.u32 %s141, 4
          %s150 = int_to_ptr.vmem [resolvable:$true] %s149
          %152 = dma.hbm_to_vmem [thread:$0]  %s147, 128, %s150, %s138
        $region28: #{tpu_custom_call.1} parent=23 // pred_fallthru
          _
      $region24: #{tpu_custom_call.1} parent=5 // pred_fallthru
        _
      %p153 = scmp.le.s32.totalorder 1, %s15
      %p154 = scmp.lt.s32.totalorder %s15, 3
      %p155 = pnand %p153, %p154
      %p156 = pneg %p155
      // Predicated region
      $region29: #{tpu_custom_call.1} parent=5 // pred_check
        _
      $region30: #{tpu_custom_call.1} parent=5 // pred_check_branch
        %158 = sbr.rel (%p155) target = $region32
      $region31: #{tpu_custom_call.1} parent=5 // pred_region
        %s159 = ssub.s32 %s15, 1
        %s160 = sand.u32 %s28, 1
        %s161 = scalar_lea.sflag [#allocation5], %s160
        %s162 = sand.u32 %s28, 1
        %s163 = smul.addr %s162, 8
        %s164 = scalar_lea.vmem [#allocation4], %s163
        // Predicated region
        $region33: #{tpu_custom_call.1} parent=31 // pred_check
          %p165 = pneg %p41
        $region34: #{tpu_custom_call.1} parent=31 // pred_check_branch
          %167 = sbr.rel (%p165) target = $region36
        $region35: #{tpu_custom_call.1} parent=31 // pred_region
          %168 = dma.done %s161, 128
        $region36: #{tpu_custom_call.1} parent=31 // pred_fallthru
          _
        %s169 = sand.u32 %s28, 1
        %s170 = scalar_lea.sflag [#allocation5], %s169
        %s171 = sand.u32 %s28, 1
        %s172 = smul.addr %s171, 8
        %s173 = scalar_lea.vmem [#allocation4], %s172
        %p174 = pneg %p41
        %p175 = pneg %p38
        %p176 = pneg %p62
        %p177 = pneg %p59
        %p178 = pneg %p83
        %p179 = pneg %p80
        %p180 = pneg %p109
        %p181 = pneg %p106
        %s182 = sand.u32 %s96, 1
        %s183 = scalar_lea.sflag [#allocation6], %s182
        %s184 = sand.u32 %s96, 1
        %s185 = smul.addr %s184, 8
        %s186 = scalar_lea.vmem [#allocation7], %s185
        %v187 = vld [vmem:[%s164] sm:$0xff]
        %v188 = vlaneseq
        %v189 = vand.u32 %v188, 127
        %v190 = vadd.s32 %v189, 128
        %vm191 = vcmp.lt.s32.totalorder %v189, 0
        %v192 = vsub.s32 0, %v189
        %v193 = vsel %vm191, %v192, %v189
        %v194 = vshrl.u32 %v193, 4
        %v195 = vand.u32 %v193, 15
        %v196 = vsub.s32 0, %v195
        %v197 = vsel %vm191, %v196, %v195
        %vm198 = vcmp.lt.s32.totalorder %v190, 0
        %v199 = vsub.s32 0, %v190
        %v200 = vsel %vm198, %v199, %v190
        %v201 = vshrl.u32 %v200, 4
        %v202 = vand.u32 %v200, 15
        %v203 = vsub.s32 0, %v202
        %v204 = vsel %vm198, %v203, %v202
        %vm205 = vcmp.ne.s32.totalorder %v197, 0
        %vm206 = vcmp.ne.s32.totalorder %v204, 0
        %vm207 = vcmp.lt.s32.totalorder %v197, 0
        %vm208 = vcmp.lt.s32.totalorder %v204, 0
        %vm209 = vmand %vm207, %vm205
        %vm210 = vmand %vm208, %vm206
        %v211 = vadd.s32 %v197, 16
        %v212 = vadd.s32 %v204, 16
        %v213 = vsel %vm209, %v211, %v197
        %v214 = vsel %vm210, %v212, %v204
        %vm215 = vcmp.ge.s32.totalorder %v213, 1
        %vm216 = vcmp.ge.s32.totalorder %v214, 1
        %vm217 = vcmp.le.s32.totalorder %v213, 14
        %vm218 = vcmp.le.s32.totalorder %v214, 14
        %vm219 = vcmask 134144
        %220 = vst.msk [vmem:[#allocation2] sm:$0xf] %vm219, 0.0
        %vm221 = vcmask 273544
        %222 = vst.msk [vmem:[#allocation2 + $0x8] sm:$0xf] %vm221, 0.0
        %v223 = vld [vmem:[%s1] sm:$0xf]
        %s224 = scalar_lea.vmem %s1, 4
        %v225 = vld [vmem:[%s224] sm:$0xf]
        %v226 = vld [vmem:[%s2] sm:$0xf]
        %s227 = scalar_lea.vmem %s2, 4
        %v228 = vld [vmem:[%s227] sm:$0xf]
        %230 = vrot.lane.b32.xlu0 %v187, 17
        %v231 = vpop.permute.xlu0 %230
        %v232 = vrot.slane %v231, 4
        %vm233 = vcmask 138240
        %v234 = vsel %vm233, %v232, %v231
        %vm237 = vcmask 1043592
        %vm238 = vcmask 1047556
        %vm239 = vmor %vm238, %vm237
        %240 = vst.msk [vmem:[#allocation2] sm:$0xff] %vm239, %v234
        %241 = vst.msk [vmem:[#allocation2 + $0x8] sm:$0xf] %vm219, %v232
        %v242 = vld [vmem:[#allocation2] sm:$0xff]
        %v243 = vsel %vm215, 1, 0
        %v244 = vsel %vm216, 1, 0
        %vm245 = vcmp.eq.s32.totalorder %v243, 1
        %vm246 = vcmp.eq.s32.totalorder %v244, 1
        %v248 = vcombine.high %v242, %v242
        %v250 = vsel %vm245, %v242, 0.0
        %v251 = vsel %vm246, %v248, 0.0
        %252 = vst [vmem:[#allocation3] sm:$0xf] %v250
        %253 = vst [vmem:[#allocation3 + $0x8] sm:$0xf] %v251
        %v254 = vld [vmem:[#allocation2] sm:$0xff]
        %v255 = vld [vmem:[#allocation2 + $0x8] sm:$0xf]
        %v258 = vcombine.low %v254, %v254
        %v259 = vcombine.low %v255, %v255
        %260 = vrot.lane.b32.xlu0 %v258, 127
        %v261 = vpop.permute.xlu0 %260
        %262 = vrot.lane.b32.xlu0 %v254, 127
        %v263 = vpop.permute.xlu0 %262
        %264 = vrot.lane.b32.xlu0 %v259, 127
        %v265 = vpop.permute.xlu0 %264
        %vm266 = vcmask 1039360
        %v267 = vsel %vm266, %v261, %v263
        %v268 = vsel %vm266, %v263, %v265
        %271 = vst [vmem:[#allocation3] sm:$0xf0] %v267
        %272 = vst [vmem:[#allocation3 + $0x8] sm:$0xf0] %v268
        %v273 = vld [vmem:[#allocation2] sm:$0xff]
        %v274 = vld [vmem:[#allocation2 + $0x8] sm:$0xf]
        %v275 = vsel %vm217, 1, 0
        %v276 = vsel %vm218, 1, 0
        %vm277 = vcmp.eq.s32.totalorder %v275, 1
        %vm278 = vcmp.eq.s32.totalorder %v276, 1
        %v281 = vcombine.high %v273, %v273
        %282 = vrot.lane.b32.xlu0 %v273, 126
        %v283 = vpop.permute.xlu0 %282
        %284 = vrot.lane.b32.xlu0 %v281, 126
        %v285 = vpop.permute.xlu0 %284
        %286 = vrot.lane.b32.xlu0 %v274, 126
        %v287 = vpop.permute.xlu0 %286
        %vm288 = vcmask 1031168
        %v289 = vsel %vm288, %v283, %v285
        %v290 = vsel %vm288, %v285, %v287
        %v293 = vsel %vm277, %v289, 0.0
        %v294 = vsel %vm278, %v290, 0.0
        %295 = vst [vmem:[#allocation3 + $0x10] sm:$0xf] %v293
        %296 = vst [vmem:[#allocation3 + $0x18] sm:$0xf] %v294
        %v297 = vld [vmem:[#allocation2] sm:$0xff]
        %v298 = vld [vmem:[#allocation2 + $0x8] sm:$0xf]
        %v301 = vcombine.high %v297, %v297
        %302 = vrot.lane.b32.xlu0 %v297, 112
        %v303 = vpop.permute.xlu0 %302
        %304 = vrot.lane.b32.xlu0 %v301, 112
        %v305 = vpop.permute.xlu0 %304
        %306 = vrot.lane.b32.xlu0 %v298, 112
        %v307 = vpop.permute.xlu0 %306
        %vm308 = vcmask 916480
        %v309 = vsel %vm308, %v303, %v305
        %v310 = vsel %vm308, %v305, %v307
        %v313 = vsel %vm245, %v309, 0.0
        %v314 = vsel %vm246, %v310, 0.0
        %v317 = vrot.slane %v313, 4
        %v318 = vrot.slane %v314, 4
        %321 = vst [vmem:[#allocation3 + $0x10] sm:$0xf0] %v317
        %322 = vst [vmem:[#allocation3 + $0x18] sm:$0xf0] %v318
        %v323 = vcombine.high %v187, %v187
        %325 = vst [vmem:[#allocation3 + $0x20] sm:$0xf] %v187
        %326 = vst [vmem:[#allocation3 + $0x28] sm:$0xf] %v323
        %v327 = vld [vmem:[#allocation2] sm:$0xff]
        %v328 = vld [vmem:[#allocation2 + $0x8] sm:$0xf]
        %v331 = vcombine.high %v327, %v327
        %332 = vrot.lane.b32.xlu0 %v327, 110
        %v333 = vpop.permute.xlu0 %332
        %334 = vrot.lane.b32.xlu0 %v331, 110
        %v335 = vpop.permute.xlu0 %334
        %336 = vrot.lane.b32.xlu0 %v328, 110
        %v337 = vpop.permute.xlu0 %336
        %vm338 = vcmask 900096
        %v339 = vsel %vm338, %v333, %v335
        %v340 = vsel %vm338, %v335, %v337
        %v343 = vsel %vm277, %v339, 0.0
        %v344 = vsel %vm278, %v340, 0.0
        %v347 = vrot.slane %v343, 4
        %v348 = vrot.slane %v344, 4
        %351 = vst [vmem:[#allocation3 + $0x20] sm:$0xf0] %v347
        %352 = vst [vmem:[#allocation3 + $0x28] sm:$0xf0] %v348
        %v353 = vld [vmem:[#allocation2] sm:$0xff]
        %v354 = vld [vmem:[#allocation2 + $0x8] sm:$0xf]
        %v357 = vcombine.high %v353, %v353
        %358 = vrot.lane.b32.xlu0 %v353, 96
        %v359 = vpop.permute.xlu0 %358
        %360 = vrot.lane.b32.xlu0 %v357, 96
        %v361 = vpop.permute.xlu0 %360
        %362 = vrot.lane.b32.xlu0 %v354, 96
        %v363 = vpop.permute.xlu0 %362
        %vm364 = vcmask 785408
        %v365 = vsel %vm364, %v359, %v361
        %v366 = vsel %vm364, %v361, %v363
        %v369 = vsel %vm245, %v365, 0.0
        %v370 = vsel %vm246, %v366, 0.0
        %371 = vst [vmem:[#allocation3 + $0x30] sm:$0xf] %v369
        %372 = vst [vmem:[#allocation3 + $0x38] sm:$0xf] %v370
        %v373 = vld [vmem:[#allocation2] sm:$0xff]
        %v374 = vld [vmem:[#allocation2 + $0x8] sm:$0xf]
        %v377 = vcombine.low %v373, %v373
        %v378 = vcombine.low %v374, %v374
        %379 = vrot.lane.b32.xlu0 %v377, 95
        %v380 = vpop.permute.xlu0 %379
        %381 = vrot.lane.b32.xlu0 %v373, 95
        %v382 = vpop.permute.xlu0 %381
        %383 = vrot.lane.b32.xlu0 %v378, 95
        %v384 = vpop.permute.xlu0 %383
        %vm385 = vcmask 777216
        %v386 = vsel %vm385, %v380, %v382
        %v387 = vsel %vm385, %v382, %v384
        %390 = vst [vmem:[#allocation3 + $0x30] sm:$0xf0] %v386
        %391 = vst [vmem:[#allocation3 + $0x38] sm:$0xf0] %v387
        %v392 = vld [vmem:[#allocation2] sm:$0xff]
        %v393 = vld [vmem:[#allocation2 + $0x8] sm:$0xf]
        %v396 = vcombine.high %v392, %v392
        %397 = vrot.lane.b32.xlu0 %v392, 94
        %v398 = vpop.permute.xlu0 %397
        %399 = vrot.lane.b32.xlu0 %v396, 94
        %v400 = vpop.permute.xlu0 %399
        %401 = vrot.lane.b32.xlu0 %v393, 94
        %v402 = vpop.permute.xlu0 %401
        %vm403 = vcmask 769024
        %v404 = vsel %vm403, %v398, %v400
        %v405 = vsel %vm403, %v400, %v402
        %v408 = vsel %vm277, %v404, 0.0
        %v409 = vsel %vm278, %v405, 0.0
        %410 = vst [vmem:[#allocation3 + $0x40] sm:$0xf] %v408
        %411 = vst [vmem:[#allocation3 + $0x48] sm:$0xf] %v409
        %v412 = vld [vmem:[#allocation3] sm:$0xff]
        %v413 = vld [vmem:[#allocation3 + $0x8] sm:$0xff]
        %v414 = vld [vmem:[#allocation3 + $0x10] sm:$0xff]
        %v415 = vld [vmem:[#allocation3 + $0x18] sm:$0xff]
        %v416 = vld [vmem:[#allocation3 + $0x20] sm:$0xff]
        %v417 = vld [vmem:[#allocation3 + $0x28] sm:$0xff]
        %v418 = vld [vmem:[#allocation3 + $0x30] sm:$0xff]
        %v419 = vld [vmem:[#allocation3 + $0x38] sm:$0xff]
        %v420 = vld [vmem:[#allocation3 + $0x40] sm:$0xf]
        %v421 = vld [vmem:[#allocation3 + $0x48] sm:$0xf]
        %423 = vset.pattern.permute.xlu0 0
        %424 = vperm.xlu0 %423, %v226
        %v425 = vpop.permute.xlu0 %424
        %vm427 = vcmask 293888
        %v429 = vsel %vm427, %v223, 0
        %vm431 = vcmask 1043456
        %v433 = vsel %vm431, %v420, 0
        %v436 = vsel %vm431, %v421, 0
        %438 = vmatprep.subr.mxu0 0.0
        %439 = vmatpush1.msra.mxu0 0.0
        %440 = vmatprep.subr.mxu0 0.0
        %441 = vmatpush1.msra.mxu0 0.0
        %442 = vmatprep.subr.mxu0 0.0
        %443 = vmatpush1.msra.mxu0 0.0
        %444 = vmatprep.subr.mxu0 0.0
        %445 = vmatpush1.msra.mxu0 0.0
        %446 = vmatprep.subr.mxu0 0.0
        %447 = vmatpush1.msra.mxu0 0.0
        %448 = vmatprep.subr.mxu0 0.0
        %449 = vmatpush1.msra.mxu0 0.0
        %450 = vmatprep.subr.mxu0 0.0
        %451 = vmatpush1.msra.mxu0 0.0
        %452 = vmatprep.subr.mxu0 0.0
        %453 = vmatpush1.msra.mxu0 0.0
        %454 = vmatprep.subr.mxu0 0.0
        %455 = vmatpush1.msra.mxu0 0.0
        %456 = vmatprep.subr.mxu0 0.0
        %457 = vmatpush1.msra.mxu0 0.0
        %458 = vmatprep.subr.mxu0 0.0
        %459 = vmatpush1.msra.mxu0 0.0
        %460 = vmatprep.subr.mxu0 %v436
        %461 = vmatpush1.msra.mxu0 %v433
        %462 = vmatprep.subr.mxu0 %v419
        %463 = vmatpush1.msra.mxu0 %v418
        %464 = vmatprep.subr.mxu0 %v417
        %465 = vmatpush1.msra.mxu0 %v416
        %466 = vmatprep.subr.mxu0 %v415
        %467 = vmatpush1.msra.mxu0 %v414
        %468 = vmatprep.subr.mxu0 %v413
        %469 = vmatpush1.msra.mxu0 %v412
        %470 = vmatprep.subr.mxu0 0.0
        %471 = vmatpush2.msra.mxu0 0.0
        %472 = vmatprep.subr.mxu0 0.0
        %473 = vmatpush2.msra.mxu0 0.0
        %474 = vmatprep.subr.mxu0 0.0
        %475 = vmatpush2.msra.mxu0 0.0
        %476 = vmatprep.subr.mxu0 0.0
        %477 = vmatpush2.msra.mxu0 0.0
        %478 = vmatprep.subr.mxu0 0.0
        %479 = vmatpush2.msra.mxu0 0.0
        %480 = vmatprep.subr.mxu0 0.0
        %481 = vmatpush2.msra.mxu0 0.0
        %482 = vmatprep.subr.mxu0 0.0
        %483 = vmatpush2.msra.mxu0 0.0
        %484 = vmatprep.subr.mxu0 0.0
        %485 = vmatpush2.msra.mxu0 0.0
        %486 = vmatprep.subr.mxu0 0.0
        %487 = vmatpush2.msra.mxu0 0.0
        %488 = vmatprep.subr.mxu0 0.0
        %489 = vmatpush2.msra.mxu0 0.0
        %490 = vmatprep.subr.mxu0 0.0
        %491 = vmatpush2.msra.mxu0 0.0
        %492 = vmatprep.subr.mxu0 0.0
        %493 = vmatpush2.msra.mxu0 0.0
        %494 = vmatprep.subr.mxu0 0.0
        %495 = vmatpush2.msra.mxu0 0.0
        %496 = vmatprep.subr.mxu0 0.0
        %497 = vmatpush2.msra.mxu0 0.0
        %498 = vmatprep.subr.mxu0 0.0
        %499 = vmatpush2.msra.mxu0 0.0
        %500 = vmatprep.subr.mxu0 0.0
        %501 = vmatpush2.msra.mxu0 0.0
        %502 = vmatprep.mubr.f32.mxu0 0.0
        %503 = vmatmul.mubr.f32.gmra.mxu0 %v429
        %v504 = vpop.f32.mrf.mxu0
        %v505 = vadd.f32 %v425, %v504
        %v506 = vpop.f32.mrf.mxu0
        %v507 = vadd.f32 %v425, %v506
        %508 = vdwg.mxu0
        %v509 = vmax.f32 %v505, 0.0
        %v510 = vmax.f32 %v507, 0.0
        %v513 = vcombine.low %v509, %v510
        %514 = vrot.lane.b32.xlu0 %v513, 17
        %v515 = vpop.permute.xlu0 %514
        %v516 = vrot.slane %v515, 4
        %v517 = vsel %vm233, %v516, %v515
        %520 = vst.msk [vmem:[#allocation2] sm:$0xff] %vm239, %v517
        %521 = vst.msk [vmem:[#allocation2 + $0x8] sm:$0xf] %vm219, %v516
        %v522 = vld [vmem:[#allocation2] sm:$0xff]
        %v524 = vcombine.high %v522, %v522
        %v526 = vsel %vm245, %v522, 0.0
        %v527 = vsel %vm246, %v524, 0.0
        %528 = vst [vmem:[#allocation3] sm:$0xf] %v526
        %529 = vst [vmem:[#allocation3 + $0x8] sm:$0xf] %v527
        %v530 = vld [vmem:[#allocation2] sm:$0xff]
        %v531 = vld [vmem:[#allocation2 + $0x8] sm:$0xf]
        %v534 = vcombine.low %v530, %v530
        %v535 = vcombine.low %v531, %v531
        %536 = vrot.lane.b32.xlu0 %v534, 127
        %v537 = vpop.permute.xlu0 %536
        %538 = vrot.lane.b32.xlu0 %v530, 127
        %v539 = vpop.permute.xlu0 %538
        %540 = vrot.lane.b32.xlu0 %v535, 127
        %v541 = vpop.permute.xlu0 %540
        %v542 = vsel %vm266, %v537, %v539
        %v543 = vsel %vm266, %v539, %v541
        %546 = vst [vmem:[#allocation3] sm:$0xf0] %v542
        %547 = vst [vmem:[#allocation3 + $0x8] sm:$0xf0] %v543
        %v548 = vld [vmem:[#allocation2] sm:$0xff]
        %v549 = vld [vmem:[#allocation2 + $0x8] sm:$0xf]
        %v552 = vcombine.high %v548, %v548
        %553 = vrot.lane.b32.xlu0 %v548, 126
        %v554 = vpop.permute.xlu0 %553
        %555 = vrot.lane.b32.xlu0 %v552, 126
        %v556 = vpop.permute.xlu0 %555
        %557 = vrot.lane.b32.xlu0 %v549, 126
        %v558 = vpop.permute.xlu0 %557
        %v559 = vsel %vm288, %v554, %v556
        %v560 = vsel %vm288, %v556, %v558
        %v563 = vsel %vm277, %v559, 0.0
        %v564 = vsel %vm278, %v560, 0.0
        %565 = vst [vmem:[#allocation3 + $0x10] sm:$0xf] %v563
        %566 = vst [vmem:[#allocation3 + $0x18] sm:$0xf] %v564
        %v567 = vld [vmem:[#allocation2] sm:$0xff]
        %v568 = vld [vmem:[#allocation2 + $0x8] sm:$0xf]
        %v571 = vcombine.high %v567, %v567
        %572 = vrot.lane.b32.xlu0 %v567, 112
        %v573 = vpop.permute.xlu0 %572
        %574 = vrot.lane.b32.xlu0 %v571, 112
        %v575 = vpop.permute.xlu0 %574
        %576 = vrot.lane.b32.xlu0 %v568, 112
        %v577 = vpop.permute.xlu0 %576
        %v578 = vsel %vm308, %v573, %v575
        %v579 = vsel %vm308, %v575, %v577
        %v582 = vsel %vm245, %v578, 0.0
        %v583 = vsel %vm246, %v579, 0.0
        %v586 = vrot.slane %v582, 4
        %v587 = vrot.slane %v583, 4
        %590 = vst [vmem:[#allocation3 + $0x10] sm:$0xf0] %v586
        %591 = vst [vmem:[#allocation3 + $0x18] sm:$0xf0] %v587
        %592 = vst [vmem:[#allocation3 + $0x20] sm:$0xf] %v509
        %593 = vst [vmem:[#allocation3 + $0x28] sm:$0xf] %v510
        %v594 = vld [vmem:[#allocation2] sm:$0xff]
        %v595 = vld [vmem:[#allocation2 + $0x8] sm:$0xf]
        %v598 = vcombine.high %v594, %v594
        %599 = vrot.lane.b32.xlu0 %v594, 110
        %v600 = vpop.permute.xlu0 %599
        %601 = vrot.lane.b32.xlu0 %v598, 110
        %v602 = vpop.permute.xlu0 %601
        %603 = vrot.lane.b32.xlu0 %v595, 110
        %v604 = vpop.permute.xlu0 %603
        %v605 = vsel %vm338, %v600, %v602
        %v606 = vsel %vm338, %v602, %v604
        %v609 = vsel %vm277, %v605, 0.0
        %v610 = vsel %vm278, %v606, 0.0
        %v613 = vrot.slane %v609, 4
        %v614 = vrot.slane %v610, 4
        %617 = vst [vmem:[#allocation3 + $0x20] sm:$0xf0] %v613
        %618 = vst [vmem:[#allocation3 + $0x28] sm:$0xf0] %v614
        %v619 = vld [vmem:[#allocation2] sm:$0xff]
        %v620 = vld [vmem:[#allocation2 + $0x8] sm:$0xf]
        %v623 = vcombine.high %v619, %v619
        %624 = vrot.lane.b32.xlu0 %v619, 96
        %v625 = vpop.permute.xlu0 %624
        %626 = vrot.lane.b32.xlu0 %v623, 96
        %v627 = vpop.permute.xlu0 %626
        %628 = vrot.lane.b32.xlu0 %v620, 96
        %v629 = vpop.permute.xlu0 %628
        %v630 = vsel %vm364, %v625, %v627
        %v631 = vsel %vm364, %v627, %v629
        %v634 = vsel %vm245, %v630, 0.0
        %v635 = vsel %vm246, %v631, 0.0
        %636 = vst [vmem:[#allocation3 + $0x30] sm:$0xf] %v634
        %637 = vst [vmem:[#allocation3 + $0x38] sm:$0xf] %v635
        %v638 = vld [vmem:[#allocation2] sm:$0xff]
        %v639 = vld [vmem:[#allocation2 + $0x8] sm:$0xf]
        %v642 = vcombine.low %v638, %v638
        %v643 = vcombine.low %v639, %v639
        %644 = vrot.lane.b32.xlu0 %v642, 95
        %v645 = vpop.permute.xlu0 %644
        %646 = vrot.lane.b32.xlu0 %v638, 95
        %v647 = vpop.permute.xlu0 %646
        %648 = vrot.lane.b32.xlu0 %v643, 95
        %v649 = vpop.permute.xlu0 %648
        %v650 = vsel %vm385, %v645, %v647
        %v651 = vsel %vm385, %v647, %v649
        %654 = vst [vmem:[#allocation3 + $0x30] sm:$0xf0] %v650
        %655 = vst [vmem:[#allocation3 + $0x38] sm:$0xf0] %v651
        %v656 = vld [vmem:[#allocation2] sm:$0xff]
        %v657 = vld [vmem:[#allocation2 + $0x8] sm:$0xf]
        %v660 = vcombine.high %v656, %v656
        %661 = vrot.lane.b32.xlu0 %v656, 94
        %v662 = vpop.permute.xlu0 %661
        %663 = vrot.lane.b32.xlu0 %v660, 94
        %v664 = vpop.permute.xlu0 %663
        %665 = vrot.lane.b32.xlu0 %v657, 94
        %v666 = vpop.permute.xlu0 %665
        %v667 = vsel %vm403, %v662, %v664
        %v668 = vsel %vm403, %v664, %v666
        %v671 = vsel %vm277, %v667, 0.0
        %v672 = vsel %vm278, %v668, 0.0
        %673 = vst [vmem:[#allocation3 + $0x40] sm:$0xf] %v671
        %674 = vst [vmem:[#allocation3 + $0x48] sm:$0xf] %v672
        %v675 = vld [vmem:[#allocation3] sm:$0xff]
        %v676 = vld [vmem:[#allocation3 + $0x8] sm:$0xff]
        %v677 = vld [vmem:[#allocation3 + $0x10] sm:$0xff]
        %v678 = vld [vmem:[#allocation3 + $0x18] sm:$0xff]
        %v679 = vld [vmem:[#allocation3 + $0x20] sm:$0xff]
        %v680 = vld [vmem:[#allocation3 + $0x28] sm:$0xff]
        %v681 = vld [vmem:[#allocation3 + $0x30] sm:$0xff]
        %v682 = vld [vmem:[#allocation3 + $0x38] sm:$0xff]
        %v683 = vld [vmem:[#allocation3 + $0x40] sm:$0xf]
        %v684 = vld [vmem:[#allocation3 + $0x48] sm:$0xf]
        %686 = vset.pattern.permute.xlu0 0
        %687 = vperm.xlu0 %686, %v228
        %v688 = vpop.permute.xlu0 %687
        %v691 = vsel %vm427, %v225, 0
        %v694 = vsel %vm431, %v683, 0
        %v697 = vsel %vm431, %v684, 0
        %699 = vmatprep.subr.mxu0 0.0
        %700 = vmatpush1.msra.mxu0 0.0
        %701 = vmatprep.subr.mxu0 0.0
        %702 = vmatpush1.msra.mxu0 0.0
        %703 = vmatprep.subr.mxu0 0.0
        %704 = vmatpush1.msra.mxu0 0.0
        %705 = vmatprep.subr.mxu0 0.0
        %706 = vmatpush1.msra.mxu0 0.0
        %707 = vmatprep.subr.mxu0 0.0
        %708 = vmatpush1.msra.mxu0 0.0
        %709 = vmatprep.subr.mxu0 0.0
        %710 = vmatpush1.msra.mxu0 0.0
        %711 = vmatprep.subr.mxu0 0.0
        %712 = vmatpush1.msra.mxu0 0.0
        %713 = vmatprep.subr.mxu0 0.0
        %714 = vmatpush1.msra.mxu0 0.0
        %715 = vmatprep.subr.mxu0 0.0
        %716 = vmatpush1.msra.mxu0 0.0
        %717 = vmatprep.subr.mxu0 0.0
        %718 = vmatpush1.msra.mxu0 0.0
        %719 = vmatprep.subr.mxu0 0.0
        %720 = vmatpush1.msra.mxu0 0.0
        %721 = vmatprep.subr.mxu0 %v697
        %722 = vmatpush1.msra.mxu0 %v694
        %723 = vmatprep.subr.mxu0 %v682
        %724 = vmatpush1.msra.mxu0 %v681
        %725 = vmatprep.subr.mxu0 %v680
        %726 = vmatpush1.msra.mxu0 %v679
        %727 = vmatprep.subr.mxu0 %v678
        %728 = vmatpush1.msra.mxu0 %v677
        %729 = vmatprep.subr.mxu0 %v676
        %730 = vmatpush1.msra.mxu0 %v675
        %731 = vmatprep.subr.mxu0 0.0
        %732 = vmatpush2.msra.mxu0 0.0
        %733 = vmatprep.subr.mxu0 0.0
        %734 = vmatpush2.msra.mxu0 0.0
        %735 = vmatprep.subr.mxu0 0.0
        %736 = vmatpush2.msra.mxu0 0.0
        %737 = vmatprep.subr.mxu0 0.0
        %738 = vmatpush2.msra.mxu0 0.0
        %739 = vmatprep.subr.mxu0 0.0
        %740 = vmatpush2.msra.mxu0 0.0
        %741 = vmatprep.subr.mxu0 0.0
        %742 = vmatpush2.msra.mxu0 0.0
        %743 = vmatprep.subr.mxu0 0.0
        %744 = vmatpush2.msra.mxu0 0.0
        %745 = vmatprep.subr.mxu0 0.0
        %746 = vmatpush2.msra.mxu0 0.0
        %747 = vmatprep.subr.mxu0 0.0
        %748 = vmatpush2.msra.mxu0 0.0
        %749 = vmatprep.subr.mxu0 0.0
        %750 = vmatpush2.msra.mxu0 0.0
        %751 = vmatprep.subr.mxu0 0.0
        %752 = vmatpush2.msra.mxu0 0.0
        %753 = vmatprep.subr.mxu0 0.0
        %754 = vmatpush2.msra.mxu0 0.0
        %755 = vmatprep.subr.mxu0 0.0
        %756 = vmatpush2.msra.mxu0 0.0
        %757 = vmatprep.subr.mxu0 0.0
        %758 = vmatpush2.msra.mxu0 0.0
        %759 = vmatprep.subr.mxu0 0.0
        %760 = vmatpush2.msra.mxu0 0.0
        %761 = vmatprep.subr.mxu0 0.0
        %762 = vmatpush2.msra.mxu0 0.0
        %763 = vmatprep.mubr.f32.mxu0 0.0
        %764 = vmatmul.mubr.f32.gmra.mxu0 %v691
        %v765 = vpop.f32.mrf.mxu0
        %v766 = vadd.f32 %v688, %v765
        %v767 = vpop.f32.mrf.mxu0
        %v768 = vadd.f32 %v688, %v767
        %769 = vdwg.mxu0
        %v770 = vadd.f32 %v766, %v187
        %v771 = vadd.f32 %v768, %v323
        %v772 = vmax.f32 %v770, 0.0
        %v773 = vmax.f32 %v771, 0.0
        %v776 = vcombine.low %v772, %v773
        %778 = vst [vmem:[%s186] sm:$0xff] %v776
        %s779 = sand.u32 %s96, 1
        %s780 = scalar_lea.sflag [#allocation6], %s779
        %s781 = sand.u32 %s96, 1
        %s782 = smul.addr %s781, 8
        %s783 = scalar_lea.vmem [#allocation7], %s782
        // Predicated region
        $region37: #{tpu_custom_call.1} parent=31 // pred_check
          %p784 = pneg %p106
        $region38: #{tpu_custom_call.1} parent=31 // pred_check_branch
          %786 = sbr.rel (%p784) target = $region40
        $region39: #{tpu_custom_call.1} parent=31 // pred_region
          %s788 = ssub.s32 128, 128
          %789 = vsyncadd %s780, %s788
          %s790 = smul.addr %s20, 2
          %s791 = smul.addr %s790, 64
          %s792 = scalar_lea.hbm %s3, %s791
          %s794 = sshll.u32 %s783, 4
          %s795 = int_to_ptr.vmem [resolvable:$true] %s794
          %797 = dma.vmem_to_hbm [thread:$0]  %s795, 128, %s792, %s780
        $region40: #{tpu_custom_call.1} parent=31 // pred_fallthru
          _
      $region32: #{tpu_custom_call.1} parent=5 // pred_fallthru
        _
      %p798 = scmp.le.s32.totalorder 2, %s15
      // Predicated region
      $region41: #{tpu_custom_call.1} parent=5 // pred_check
        %p799 = pneg %p798
      $region42: #{tpu_custom_call.1} parent=5 // pred_check_branch
        %801 = sbr.rel (%p799) target = $region44
      $region43: #{tpu_custom_call.1} parent=5 // pred_region
        %s802 = ssub.s32 %s15, 2
        // Predicated region
        $region45: #{tpu_custom_call.1} parent=43 // pred_check
          %p803 = pneg %p112
        $region46: #{tpu_custom_call.1} parent=43 // pred_check_branch
          %805 = sbr.rel (%p803) target = $region48
        $region47: #{tpu_custom_call.1} parent=43 // pred_region
          %s806 = sand.u32 %s97, 1
          %s807 = scalar_lea.sflag [#allocation6], %s806
          %s808 = sand.u32 %s97, 1
          %s809 = smul.addr %s808, 8
          %s810 = scalar_lea.vmem [#allocation7], %s809
          %811 = dma.done %s807, 128
        $region48: #{tpu_custom_call.1} parent=43 // pred_fallthru
          _
      $region44: #{tpu_custom_call.1} parent=5 // pred_fallthru
        _
    $region6: #{tpu_custom_call.1} parent=1 // loop_footer
      %s19 = sadd.s32 1, %s15
    $region7: #{tpu_custom_call.1} parent=1 // loop_footer_branch
      %14 = sbr.rel target = $region3
    $region8: #{tpu_custom_call.1} parent=1 // loop_exit
      _
    %812 = vsyncpa [#allocation5], 1
    %s813 = scalar_lea.sflag [#allocation5], 1
    %814 = vsyncpa %s813, 1
    %815 = vsyncpa [#allocation6], 1
    %s816 = scalar_lea.sflag [#allocation6], 1
    %817 = vsyncpa %s816, 1

</llo_original>
